<compile_context>
chip_gen: v5e
topology: v5e:2x2
jax: 0.10.0
libtpu: 0.0.40
codegen_flags: <defaults>
</compile_context>

<pallas_src>
import functools
import math

import jax
import jax.numpy as jnp
from jax.experimental import pallas as pl
from jax.experimental.pallas import tpu as pltpu


@functools.lru_cache(maxsize=None)
def _vmem_limit():
    """Generation-aware VMEM request: ~3/4 of physical (96 MiB on v5e/v6e
    with 128 MiB, 48 MiB on v7x with 64 MiB), never below the 32 MiB scoped
    default."""
    try:
        cap = pltpu.get_tpu_info().vmem_capacity_bytes
    except Exception:
        cap = 64 * 1024 * 1024
    return max(32 * 1024 * 1024, min(int(cap * 3) // 4, 100 * 1024 * 1024))


def _reduction_tile(dim, pref):
    """Tile for a matmul contraction axis: full dim if small, else the largest
    divisor of `dim` from a 128-multiple ladder; fall back to the full dim
    (single block) so padded garbage never enters the accumulation."""
    if dim <= pref:
        return dim
    for t in (pref, pref // 2, pref // 4, 512, 384, 256, 128):
        if 0 < t <= pref and dim % t == 0:
            return t
    return dim


def _kv_tile(dim, pref):
    """Tile for the attention kv axis (softmax reduction): full dim if small,
    else the largest 8-multiple <= pref that divides dim."""
    if dim <= pref:
        return dim
    for t in (pref, pref // 2, 256, 128, 64, 32, 16, 8):
        if 0 < t <= pref and dim % t == 0:
            return t
    return dim


# --------------------------------------------------------------------------
# Tiled linear kernels: y = x @ W_t + b   (W_t stored as [IN, OUT])
# bf16 MXU operands, f32 accumulation.
# --------------------------------------------------------------------------
def _linear_kernel_acc(x_ref, wt_ref, b_ref, o_ref, acc_ref):
    k = pl.program_id(2)

    @pl.when(k == 0)
    def _():
        acc_ref[...] = jnp.zeros_like(acc_ref)

    acc_ref[...] += jnp.dot(x_ref[...].astype(jnp.bfloat16),
                            wt_ref[...].astype(jnp.bfloat16),
                            preferred_element_type=jnp.float32)

    @pl.when(k == pl.num_programs(2) - 1)
    def _():
        o_ref[...] = (acc_ref[...] + b_ref[...]).astype(o_ref.dtype)


def _linear_kernel_single_k(x_ref, wt_ref, b_ref, o_ref):
    # Fast path: the whole contraction fits in one block -> no accumulator
    # scratch round-trip.
    o_ref[...] = (jnp.dot(x_ref[...].astype(jnp.bfloat16),
                          wt_ref[...].astype(jnp.bfloat16),
                          preferred_element_type=jnp.float32)
                  + b_ref[...]).astype(o_ref.dtype)


def linear_pallas(x, w_t, b, *, tm=512, tn=512, tk=1024):
    """x: (M, IN), w_t: (IN, OUT) pre-transposed, b: (OUT,) -> (M, OUT)."""
    M, IN = x.shape
    OUT = w_t.shape[1]

    tm = min(tm, M)
    tn = min(tn, OUT)
    tk = _reduction_tile(IN, tk)
    nk = IN // tk
    grid = (pl.cdiv(M, tm), pl.cdiv(OUT, tn), nk)

    if nk == 1:
        kernel = _linear_kernel_single_k
        scratch = []
    else:
        kernel = _linear_kernel_acc
        scratch = [pltpu.VMEM((tm, tn), jnp.float32)]

    return pl.pallas_call(
        kernel,
        out_shape=jax.ShapeDtypeStruct((M, OUT), x.dtype),
        grid_spec=pltpu.PrefetchScalarGridSpec(
            num_scalar_prefetch=0,
            grid=grid,
            in_specs=[
                pl.BlockSpec((tm, tk), lambda i, j, k: (i, k)),
                pl.BlockSpec((tk, tn), lambda i, j, k: (k, j)),
                pl.BlockSpec((1, tn), lambda i, j, k: (0, j)),
            ],
            out_specs=pl.BlockSpec((tm, tn), lambda i, j, k: (i, j)),
            scratch_shapes=scratch,
        ),
        compiler_params=pltpu.CompilerParams(
            dimension_semantics=("parallel", "parallel", "arbitrary"),
            vmem_limit_bytes=_vmem_limit(),
        ),
    )(x, w_t, b.reshape(1, OUT))


# --------------------------------------------------------------------------
# Head-major flash attention.
#   grid = (B, H, sq/tq, sk/tkv); one grid step handles one head's
#   (q-tile, kv-tile) with online softmax (f32 stats, bf16 MXU operands).
#   q is pre-scaled by 1/sqrt(d_k) (folded into the q projection).
# --------------------------------------------------------------------------
def _flash_head_kernel(q_ref, k_ref, v_ref, o_ref, m_sc, l_sc, acc_sc):
    # q_ref: (tq, d_k)  k_ref: (tkv, d_k)  v_ref: (tkv, d_v)  o_ref: (tq, d_v)
    # scratch (persists across the kv grid axis): m/l (tq,1), acc (tq,d_v) f32
    kv = pl.program_id(3)

    @pl.when(kv == 0)
    def _():
        m_sc[...] = jnp.full_like(m_sc, -jnp.inf)
        l_sc[...] = jnp.zeros_like(l_sc)
        acc_sc[...] = jnp.zeros_like(acc_sc)

    # q @ k^T without an explicit transpose; bf16 operands, f32 accumulate.
    s = jax.lax.dot_general(q_ref[...].astype(jnp.bfloat16),
                            k_ref[...].astype(jnp.bfloat16),
                            (((1,), (1,)), ((), ())),
                            preferred_element_type=jnp.float32)   # (tq, tkv)

    m_prev = m_sc[...]
    m_new = jnp.maximum(m_prev, jnp.max(s, axis=-1, keepdims=True))
    alpha = jnp.exp(m_prev - m_new)
    p = jnp.exp(s - m_new)                                        # f32 exp
    l_sc[...] = alpha * l_sc[...] + jnp.sum(p, axis=-1, keepdims=True)
    acc_sc[...] = alpha * acc_sc[...] + jnp.dot(
        p.astype(jnp.bfloat16), v_ref[...].astype(jnp.bfloat16),
        preferred_element_type=jnp.float32)
    m_sc[...] = m_new

    @pl.when(kv == pl.num_programs(3) - 1)
    def _():
        o_ref[...] = (acc_sc[...] / l_sc[...]).astype(o_ref.dtype)


def attention_pallas(q, k, v, *, tq=512, tkv=256):
    """q: (B, H, sq, d_k), k: (B, H, sk, d_k), v: (B, H, sk, d_v)
    -> (B, H, sq, d_v).  q must already carry the 1/sqrt(d_k) scale."""
    batch, num_head, sq, d_k = q.shape
    sk = k.shape[2]
    d_v = v.shape[3]

    tq = min(tq, sq)
    tkv = _kv_tile(sk, tkv)
    grid = (batch, num_head, pl.cdiv(sq, tq), sk // tkv)

    return pl.pallas_call(
        _flash_head_kernel,
        out_shape=jax.ShapeDtypeStruct((batch, num_head, sq, d_v), q.dtype),
        grid_spec=pltpu.PrefetchScalarGridSpec(
            num_scalar_prefetch=0,
            grid=grid,
            in_specs=[
                pl.BlockSpec((None, None, tq, d_k),
                             lambda b, h, qi, ki: (b, h, qi, 0)),
                pl.BlockSpec((None, None, tkv, d_k),
                             lambda b, h, qi, ki: (b, h, ki, 0)),
                pl.BlockSpec((None, None, tkv, d_v),
                             lambda b, h, qi, ki: (b, h, ki, 0)),
            ],
            out_specs=pl.BlockSpec((None, None, tq, d_v),
                                   lambda b, h, qi, ki: (b, h, qi, 0)),
            scratch_shapes=[
                pltpu.VMEM((tq, 1), jnp.float32),     # running max
                pltpu.VMEM((tq, 1), jnp.float32),     # running sum
                pltpu.VMEM((tq, d_v), jnp.float32),   # running output
            ],
        ),
        compiler_params=pltpu.CompilerParams(
            dimension_semantics=("parallel", "parallel", "parallel",
                                 "arbitrary"),
            vmem_limit_bytes=_vmem_limit(),
        ),
    )(q, k, v)


# --------------------------------------------------------------------------
# Parameter init (deterministic), mirroring MultiHeadAttention.reset_parameters
# Weights are stored pre-transposed as [in, out] (no in-kernel w.T).
# --------------------------------------------------------------------------
def init_params(key, query_size, key_size, value_size):
    ks = jax.random.split(key, 8)

    def lin(kw, kb, in_dim, out_dim, std):
        w_t = std * jax.random.normal(kw, (in_dim, out_dim), jnp.float32)
        bound = 1.0 / math.sqrt(in_dim)
        b = jax.random.uniform(kb, (out_dim,), jnp.float32, -bound, bound)
        return w_t, b

    return {
        "q_in": lin(ks[0], ks[1], query_size, key_size, math.sqrt(1.0 / query_size)),
        "k_in": lin(ks[2], ks[3], key_size, key_size, math.sqrt(1.0 / key_size)),
        "v_in": lin(ks[4], ks[5], value_size, value_size, math.sqrt(1.0 / value_size)),
        "out": lin(ks[6], ks[7], value_size, value_size, math.sqrt(1.0 / value_size)),
    }


# --------------------------------------------------------------------------
# Forward pass (matches MultiHeadAttention.forward with atte_mask_out=None)
# --------------------------------------------------------------------------
def multi_head_attention(params, Q, K, V, num_head):
    batch, sq, _ = Q.shape
    sk = K.shape[1]
    key_size = params["q_in"][0].shape[1]
    value_size = params["v_in"][0].shape[1]
    d_k = key_size // num_head
    d_v = value_size // num_head

    # Fold the 1/sqrt(d_k) softmax scale into the q projection:
    # (Q @ Wq + bq) * s == Q @ (Wq*s) + bq*s.  Free (constant at trace time).
    inv_scale = 1.0 / math.sqrt(d_k)
    wq = params["q_in"][0] * inv_scale
    bq = params["q_in"][1] * inv_scale

    q = linear_pallas(Q.reshape(batch * sq, -1), wq, bq).reshape(batch, sq, key_size)
    k = linear_pallas(K.reshape(batch * sk, -1), *params["k_in"]).reshape(batch, sk, key_size)
    v = linear_pallas(V.reshape(batch * sk, -1), *params["v_in"]).reshape(batch, sk, value_size)

    # Head-major split once (XLA transpose): [B, S, H*d] -> [B, H, S, d].
    qh = q.reshape(batch, sq, num_head, d_k).transpose(0, 2, 1, 3)
    kh = k.reshape(batch, sk, num_head, d_k).transpose(0, 2, 1, 3)
    vh = v.reshape(batch, sk, num_head, d_v).transpose(0, 2, 1, 3)

    atte = attention_pallas(qh, kh, vh)                      # (B, H, sq, d_v)
    atte = atte.transpose(0, 2, 1, 3).reshape(batch * sq, value_size)

    out = linear_pallas(atte, *params["out"])
    return out.reshape(batch, sq, value_size)


# --------------------------------------------------------------------------
# Pure-JAX reference (f32, for correctness check)
# --------------------------------------------------------------------------
def reference(params, Q, K, V, num_head):
    def lin(x, w_t, b):
        return x @ w_t + b

    batch, sq, _ = Q.shape
    sk = K.shape[1]
    key_size = params["q_in"][0].shape[1]
    value_size = params["v_in"][0].shape[1]
    d_k = key_size // num_head
    d_v = value_size // num_head

    q = lin(Q, *params["q_in"]).reshape(batch, sq, num_head, d_k).transpose(0, 2, 1, 3)
    k = lin(K, *params["k_in"]).reshape(batch, sk, num_head, d_k).transpose(0, 2, 1, 3)
    v = lin(V, *params["v_in"]).reshape(batch, sk, num_head, d_v).transpose(0, 2, 1, 3)

    s = jnp.einsum("bhqd,bhkd->bhqk", q, k) / math.sqrt(d_k)
    p = jax.nn.softmax(s, axis=-1)
    atte = jnp.einsum("bhqk,bhkd->bhqd", p, v)
    atte = atte.transpose(0, 2, 1, 3).reshape(batch, sq, num_head * d_v)
    return lin(atte, *params["out"])


if __name__ == "__main__":
    batch, seq = 2, 8
    query_size = key_size = value_size = 32
    num_head = 4

    root = jax.random.PRNGKey(0)
    kp, kq, kk, kv = jax.random.split(root, 4)

    params = init_params(kp, query_size, key_size, value_size)
    Q = jax.random.normal(kq, (batch, seq, query_size), jnp.float32)
    K = jax.random.normal(kk, (batch, seq, key_size), jnp.float32)
    V = jax.random.normal(kv, (batch, seq, value_size), jnp.float32)

    out = multi_head_attention(params, Q, K, V, num_head)
    out = jax.block_until_ready(out)

    ref = reference(params, Q, K, V, num_head)
    assert out.shape == (batch, seq, value_size)
    # Tolerance accounts for bf16 MXU operands (f32 accumulation / softmax
    # stats); the reference is pure f32.
    assert jnp.allclose(out, ref, atol=3e-2, rtol=3e-2), \
        float(jnp.max(jnp.abs(out - ref)))

    print("KERNEL_OK")
</pallas_src>

<mosaic_0001>
module attributes {stable_mosaic.version = 11 : i64} {
  func.func @_linear_kernel_single_k(%arg0: i32, %arg1: i32, %arg2: i32, %arg3: memref<16x32xf32, #tpu.memory_space<vmem>>, %arg4: memref<32x32xf32, #tpu.memory_space<vmem>>, %arg5: memref<1x32xf32, #tpu.memory_space<vmem>>, %arg6: memref<16x32xf32, #tpu.memory_space<vmem>>) attributes {dimension_semantics = [#tpu.dimension_semantics<parallel>, #tpu.dimension_semantics<parallel>, #tpu.dimension_semantics<arbitrary>], iteration_bounds = array<i64: 1, 1, 1>, scalar_prefetch = 0 : i64, scratch_operands = 0 : i64, tpu.core_type = #tpu.core_type<tc>, window_params = [{transform_indices = @transform_0, window_bounds = array<i64: 16, 32>}, {transform_indices = @transform_1, window_bounds = array<i64: 32, 32>}, {transform_indices = @transform_2, window_bounds = array<i64: 1, 32>}, {transform_indices = @transform_3, window_bounds = array<i64: 16, 32>}]} {
    %c0 = arith.constant 0 : index
    %c0_0 = arith.constant 0 : index
    %0 = vector.load %arg3[%c0, %c0_0] : memref<16x32xf32, #tpu.memory_space<vmem>>, vector<16x32xf32>
    %1 = arith.truncf %0 : vector<16x32xf32> to vector<16x32xbf16>
    %c0_1 = arith.constant 0 : index
    %c0_2 = arith.constant 0 : index
    %2 = vector.load %arg4[%c0_1, %c0_2] : memref<32x32xf32, #tpu.memory_space<vmem>>, vector<32x32xf32>
    %3 = arith.truncf %2 : vector<32x32xf32> to vector<32x32xbf16>
    %cst = arith.constant dense<0.000000e+00> : vector<16x32xf32>
    %4 = tpu.matmul %1, %3, %cst {dimension_numbers = #tpu.dot_dimension_numbers<[1], [0], [0], [1], [0, 0, 1, 1], [], []>} : vector<16x32xbf16>, vector<32x32xbf16>, vector<16x32xf32> -> vector<16x32xf32>
    %c0_3 = arith.constant 0 : index
    %c0_4 = arith.constant 0 : index
    %5 = vector.load %arg5[%c0_3, %c0_4] : memref<1x32xf32, #tpu.memory_space<vmem>>, vector<1x32xf32>
    %6 = vector.broadcast %5 : vector<1x32xf32> to vector<16x32xf32>
    %7 = arith.addf %4, %6 : vector<16x32xf32>
    %c0_5 = arith.constant 0 : index
    %c0_6 = arith.constant 0 : index
    %8 = vector.load %arg6[%c0_5, %c0_6] : memref<16x32xf32, #tpu.memory_space<vmem>>, vector<16x32xf32>
    tpu.vector_store %arg6[%c0_5, %c0_6], %7 {strides = array<i32>} : memref<16x32xf32, #tpu.memory_space<vmem>>, vector<16x32xf32>,
    return
  }
  func.func @transform_0(%arg0: i32, %arg1: i32, %arg2: i32) -> (i32, i32) {
    %c0_i32 = arith.constant 0 : i32
    return %arg0, %arg2 : i32, i32
  }
  func.func @transform_1(%arg0: i32, %arg1: i32, %arg2: i32) -> (i32, i32) {
    %c0_i32 = arith.constant 0 : i32
    return %arg2, %arg1 : i32, i32
  }
  func.func @transform_2(%arg0: i32, %arg1: i32, %arg2: i32) -> (i32, i32) {
    %c0_i32 = arith.constant 0 : i32
    %c0_i32_0 = arith.constant 0 : i32
    return %c0_i32, %arg1 : i32, i32
  }
  func.func @transform_3(%arg0: i32, %arg1: i32, %arg2: i32) -> (i32, i32) {
    %c0_i32 = arith.constant 0 : i32
    return %arg0, %arg1 : i32, i32
  }
}

</mosaic_0001>

<llo_original>
// kernel: tpu_custom_call.1
$region0: #{tpu_custom_call.1}
  #allocation0 [shape = 'u32[]', space=smem, size = 0x4, offset = 0x4, fixed_abs, tag = 'smem constant byte address 0x4 - core index']
  #allocation1 [shape = 'u32[72,128]{1,0:T(1,128)}', space=vmem, size = 0x9000, scoped, tag = 'internal scratch']
  %s0 = inlined_call_operand.hbm [shape: f32[16,32], index: 0, kind: input, shape index: {}]
  %s1 = inlined_call_operand.hbm [shape: f32[32,32], index: 1, kind: input, shape index: {}]
  %s2 = inlined_call_operand.vmem [shape: f32[1,32], index: 2, kind: input, shape index: {}]
  %s3 = inlined_call_operand.hbm [shape: f32[16,32], index: 3, kind: output, shape index: {}]
  %s4 = sld [smem:[#allocation0]]
  $region30: #{tpu_custom_call.1} parent=0
    _
  %s6 = ssub.s32 1, %s4
  %s7 = scalar_select 0, %s6, %s4
  $region1: #{tpu_custom_call.1} parent=0
    #allocation2 [shape = 'u8[8192]{0}', space=vmem, size = 0x2000, scoped, tag = 'input window, operand 0, single buffered']
    #allocation3 [shape = 's32[1]{0}', space=sflag, size = 0x4, scoped, tag = 'scoped memory for tpu_custom_call.1']
    #allocation4 [shape = 's32[1]{0}', space=sflag, size = 0x4, scoped, tag = 'scoped memory for tpu_custom_call.1']
    #allocation5 [shape = 'u8[16384]{0}', space=vmem, size = 0x4000, scoped, tag = 'input window, operand 1, single buffered']
    #allocation6 [shape = 's32[1]{0}', space=sflag, size = 0x4, scoped, tag = 'scoped memory for tpu_custom_call.1']
    #allocation7 [shape = 'u8[8192]{0}', space=vmem, size = 0x2000, scoped, tag = 'output window, operand 0, single buffered']
    %8 = vsyncpa [#allocation3], 0
    %9 = vsyncpa [#allocation6], 0
    %10 = vsyncpa [#allocation4], 0
    // Predicated region
    $region2: #{tpu_custom_call.1} parent=1 // pred_check
      _
    $region3: #{tpu_custom_call.1} parent=1 // pred_check_branch
      %12 = sbr.rel (0) target = $region5
    $region4: #{tpu_custom_call.1} parent=1 // pred_region
      %14 = vsyncadd [#allocation3], 0
      %s15 = sshll.u32 %s0, 4
      %s16 = int_to_ptr.hbm [resolvable:$true] %s15
      %s17 = sshll.u32 [#allocation2], 4
      %s18 = int_to_ptr.vmem [resolvable:$true] %s17
      %23 = dma.hbm_to_vmem [thread:$0]  %s16, 256, %s18, [#allocation3], 128, 128, 8
    $region5: #{tpu_custom_call.1} parent=1 // pred_fallthru
      _
    // Predicated region
    $region6: #{tpu_custom_call.1} parent=1 // pred_check
      _
    $region7: #{tpu_custom_call.1} parent=1 // pred_check_branch
      %25 = sbr.rel (0) target = $region9
    $region8: #{tpu_custom_call.1} parent=1 // pred_region
      %27 = vsyncadd [#allocation6], 0
      %s28 = sshll.u32 %s1, 4
      %s29 = int_to_ptr.hbm [resolvable:$true] %s28
      %s30 = sshll.u32 [#allocation5], 4
      %s31 = int_to_ptr.vmem [resolvable:$true] %s30
      %36 = dma.hbm_to_vmem [thread:$0]  %s29, 512, %s31, [#allocation6], 128, 128, 8
    $region9: #{tpu_custom_call.1} parent=1 // pred_fallthru
      _
    // Predicated region
    $region10: #{tpu_custom_call.1} parent=1 // pred_check
      _
    $region11: #{tpu_custom_call.1} parent=1 // pred_check_branch
      %38 = sbr.rel (0) target = $region13
    $region12: #{tpu_custom_call.1} parent=1 // pred_region
      _
    $region13: #{tpu_custom_call.1} parent=1 // pred_fallthru
      _
    // Predicated region
    $region14: #{tpu_custom_call.1} parent=1 // pred_check
      _
    $region15: #{tpu_custom_call.1} parent=1 // pred_check_branch
      %40 = sbr.rel (0) target = $region17
    $region16: #{tpu_custom_call.1} parent=1 // pred_region
      %42 = dma.done [#allocation3], 256
    $region17: #{tpu_custom_call.1} parent=1 // pred_fallthru
      _
    // Predicated region
    $region18: #{tpu_custom_call.1} parent=1 // pred_check
      _
    $region19: #{tpu_custom_call.1} parent=1 // pred_check_branch
      %44 = sbr.rel (0) target = $region21
    $region20: #{tpu_custom_call.1} parent=1 // pred_region
      %46 = dma.done [#allocation6], 512
    $region21: #{tpu_custom_call.1} parent=1 // pred_fallthru
      _
    %v48 = vld [vmem:[#allocation2] sm:$0xff]
    %v49 = vld [vmem:[#allocation2 + $0x8] sm:$0xff]
    %v50 = vpack.c.bf16 %v49, %v48
    %v51 = vld [vmem:[#allocation5] sm:$0xff]
    %v52 = vld [vmem:[#allocation5 + $0x8] sm:$0xff]
    %v53 = vld [vmem:[#allocation5 + $0x10] sm:$0xff]
    %v54 = vld [vmem:[#allocation5 + $0x18] sm:$0xff]
    %v55 = vpack.c.bf16 %v52, %v51
    %v56 = vpack.c.bf16 %v54, %v53
    %v57 = vld [vmem:[%s2] sm:$0x1]
    %v59 = vperm.slane %v57, 0
    %vm61 = vcmask 261120
    %v63 = vsel %vm61, %v50, 0
    %65 = vmatpush.bf16.msra.mxu0 0
    %66 = vmatpush.bf16.msra.mxu0 0
    %67 = vmatpush.bf16.msra.mxu0 0
    %68 = vmatpush.bf16.msra.mxu0 0
    %69 = vmatpush.bf16.msra.mxu0 0
    %70 = vmatpush.bf16.msra.mxu0 0
    %71 = vmatpush.bf16.msra.mxu0 %v56
    %72 = vmatpush.bf16.msra.mxu0 %v55
    %73 = vmatmul.bf16.gmra.mxu0 %v63
    %v74 = vpop.f32.mrf.mxu0
    %v75 = vadd.f32 %v59, %v74
    %v76 = vpop.f32.mrf.mxu0
    %v77 = vadd.f32 %v59, %v76
    %78 = vdwg.mxu0
    %79 = vst.msk [vmem:[#allocation7] sm:$0xff] %vm61, %v75
    %80 = vst.msk [vmem:[#allocation7 + $0x8] sm:$0xff] %vm61, %v77
    // Predicated region
    $region22: #{tpu_custom_call.1} parent=1 // pred_check
      _
    $region23: #{tpu_custom_call.1} parent=1 // pred_check_branch
      %82 = sbr.rel (0) target = $region25
    $region24: #{tpu_custom_call.1} parent=1 // pred_region
      %84 = vsyncadd [#allocation4], 0
      %s85 = sshll.u32 [#allocation7], 4
      %s86 = int_to_ptr.vmem [resolvable:$true] %s85
      %s87 = sshll.u32 %s3, 4
      %s88 = int_to_ptr.hbm [resolvable:$true] %s87
      %93 = dma.vmem_to_hbm [thread:$0]  %s86, 256, %s88, [#allocation4], 128, 128, 8
    $region25: #{tpu_custom_call.1} parent=1 // pred_fallthru
      _
    // Predicated region
    $region26: #{tpu_custom_call.1} parent=1 // pred_check
      _
    $region27: #{tpu_custom_call.1} parent=1 // pred_check_branch
      %95 = sbr.rel (0) target = $region29
    $region28: #{tpu_custom_call.1} parent=1 // pred_region
      %97 = dma.done [#allocation4], 256
    $region29: #{tpu_custom_call.1} parent=1 // pred_fallthru
      _
    %98 = vsyncpa [#allocation3], 1
    %99 = vsyncpa [#allocation6], 1
    %100 = vsyncpa [#allocation4], 1

</llo_original>
